<compile_context>
chip_gen: v6e
topology: v6e:2x2x1
jax: 0.10.0
libtpu: 0.0.40
codegen_flags: <defaults>
</compile_context>

<pallas_src>
import functools

import jax
import jax.numpy as jnp
from jax.experimental import pallas as pl
from jax.experimental.pallas import tpu as pltpu


def _round_up(v, m):
    return (v + m - 1) // m * m


def _tpu_vmem_bytes():
    """Physical VMEM capacity; conservative (v7x) fallback if the query fails."""
    try:
        return int(pltpu.get_tpu_info().vmem_capacity_bytes)
    except Exception:
        return 64 * 1024 * 1024


def _pick_tile(dim_pad, rows_pad, budget_bytes, bytes_per_elem):
    """Largest lane tile in {2048,1024,512,256,128} dividing dim_pad that fits the budget."""
    for cand in (2048, 1024, 512, 256):
        if dim_pad % cand == 0 and cand * rows_pad * bytes_per_elem <= budget_bytes:
            return cand
    return 128


# ---------------------------------------------------------------------------
# Pass 1: neighbour aggregation.  s[0, i] = sum_j y[j] * A[i, j] + s_base[i]
#   A^T streamed as int8 (N_pad, TN) column tiles; cast to bf16 in-kernel.
#   No carry across grid steps -> "parallel" (both v7x TensorCores split the HBM stream).
# ---------------------------------------------------------------------------
def _agg_kernel(a_ref, y_ref, b_ref, s_ref):
    a = a_ref[...].astype(jnp.bfloat16)                 # int8 -> bf16 (VPU; mem-bound slack)
    # y is sublane-padded to 8 rows (row 0 real, rows 1..7 zero) to keep the MXU LHS aligned.
    agg = jnp.dot(y_ref[...], a, preferred_element_type=jnp.float32)   # (8, TN) f32
    s_ref[...] = agg[0:1, :] + b_ref[...]               # lane-dense (1, TN) store


# ---------------------------------------------------------------------------
# Pass 2: per-graph segment softmax + weighted add-pool, tiled over H columns.
#   Membership mask rebuilt from the batch vector (no dense one-hot M in HBM).
# ---------------------------------------------------------------------------
def _pool_kernel(s_ref, batch_ref, x_ref, out_ref, *, g_pad):
    s = s_ref[...]                                               # (1, N_pad) f32 logits
    b = batch_ref[...]                                           # (1, N_pad) i32 graph ids (-1 = pad)
    gids = jax.lax.broadcasted_iota(jnp.int32, (g_pad, 1), 0)    # (G_pad, 1)
    on = b == gids                                               # (G_pad, N_pad) membership

    masked = jnp.where(on, s, jnp.float32(-1e30))                # padded nodes never win the max
    gmax = jnp.max(masked, axis=1, keepdims=True)                # (G_pad, 1) per-graph max
    shift = jnp.sum(jnp.where(on, gmax, 0.0), axis=0, keepdims=True)   # (1, N_pad) node's graph max
    p = jnp.exp(s - shift)                                       # exp once per NODE (EUP), <= 1 real
    gsum = jnp.sum(jnp.where(on, p, 0.0), axis=1, keepdims=True)        # (G_pad, 1)
    inv = pl.reciprocal(jnp.where(gsum > 0, gsum, 1.0), approx=True)    # guard empty/padded graphs
    scores = jnp.where(on, p * inv, 0.0).astype(jnp.bfloat16)           # (G_pad, N_pad) softmax

    out_ref[...] = jnp.dot(scores, x_ref[...],
                           preferred_element_type=jnp.float32)   # (G_pad, TH), lane-dense


def global_attention_pool(x, edge_index, batch, num_graphs, w_rel, w_root, bias):
    """x: [N, H] f32, edge_index: [2, E] int32 (row 0 = src, row 1 = dst), batch: [N] int32."""
    N, H = x.shape
    G = int(num_graphs)

    H_pad = _round_up(H, 128)
    G_pad = _round_up(max(G, 8), 8)
    N_pad = _round_up(max(N, 128), 128)

    # Generation-aware VMEM budgeting (v5e/v6e: 128 MiB physical, v7x: 64 MiB).
    vmem_cap = _tpu_vmem_bytes()
    vmem_limit = min(vmem_cap * 3 // 4, 100 * 1024 * 1024)
    # Pass 1 A tile working set ~ (2 int8 bufs + bf16 cast copy) ~= 4 B/elem.
    TN = _pick_tile(N_pad, N_pad, vmem_limit // 2, bytes_per_elem=4)
    # Pass 2 x tile working set ~ 2 bf16 bufs ~= 4 B/elem.
    TH = _pick_tile(H_pad, N_pad, vmem_limit // 2, bytes_per_elem=4)

    src, dst = edge_index[0], edge_index[1]

    # ---- glue (plain JAX, O(E) scatter + O(N*H) matvec) ----
    # A^T built directly in the streamed dtype (int8): exact while per-(dst,src) edge
    # multiplicity <= 127; no f32 intermediate, no separate cast pass.
    AT = jnp.zeros((N_pad, N_pad), jnp.int8).at[src, dst].add(1)        # AT[j, i] = #edges j -> i

    # Reassociated GraphConv projections in full f32 (tiny; done here so the A-stream kernel
    # has no init carry and can be grid-parallel).  Bias folded into the base logits.
    w2 = jnp.stack([w_rel.reshape(-1), w_root.reshape(-1)], axis=1).astype(jnp.float32)  # (H, 2)
    proj = x.astype(jnp.float32) @ w2                                    # (N, 2)
    y = proj[:, 0]                                                       # x @ w_rel
    s_base = proj[:, 1] + bias.astype(jnp.float32).reshape(())           # x @ w_root + b

    y_pad = jnp.zeros((8, N_pad), jnp.bfloat16).at[0, :N].set(y.astype(jnp.bfloat16))
    sbase_row = jnp.zeros((1, N_pad), jnp.float32).at[0, :N].set(s_base)
    batch_row = jnp.full((1, N_pad), -1, jnp.int32).at[0, :N].set(batch.astype(jnp.int32))
    xp = jnp.zeros((N_pad, H_pad), jnp.bfloat16).at[:N, :H].set(x.astype(jnp.bfloat16))

    # ---- pass 1: per-node GraphConv logits (HBM-bound int8 A^T stream, fully parallel) ----
    n_a_tiles = N_pad // TN
    s_logits = pl.pallas_call(
        _agg_kernel,
        out_shape=jax.ShapeDtypeStruct((1, N_pad), jnp.float32),
        grid=(n_a_tiles,),
        in_specs=[
            pl.BlockSpec((N_pad, TN), lambda i: (0, i)),     # A^T: streamed column tiles (int8)
            pl.BlockSpec((8, N_pad), lambda i: (0, 0)),      # y  : resident (bf16)
            pl.BlockSpec((1, TN), lambda i: (0, i)),         # s_base: streamed (f32)
        ],
        out_specs=pl.BlockSpec((1, TN), lambda i: (0, i)),   # lane-dense logits row
        compiler_params=pltpu.CompilerParams(
            dimension_semantics=("parallel",),
            vmem_limit_bytes=vmem_limit,
        ),
        cost_estimate=pl.CostEstimate(
            flops=2 * N_pad * N_pad,
            transcendentals=0,
            bytes_accessed=N_pad * N_pad + 16 * N_pad + 2 * 4 * N_pad,
        ),
    )(AT, y_pad, sbase_row)

    # ---- pass 2: segment softmax + weighted add-pool (parallel over H column tiles) ----
    n_h_tiles = H_pad // TH
    pooled = pl.pallas_call(
        functools.partial(_pool_kernel, g_pad=G_pad),
        out_shape=jax.ShapeDtypeStruct((G_pad, H_pad), jnp.float32),
        grid=(n_h_tiles,),
        in_specs=[
            pl.BlockSpec((1, N_pad), lambda j: (0, 0)),      # logits: resident
            pl.BlockSpec((1, N_pad), lambda j: (0, 0)),      # batch ids: resident
            pl.BlockSpec((N_pad, TH), lambda j: (0, j)),     # x: streamed column tiles (bf16)
        ],
        out_specs=pl.BlockSpec((G_pad, TH), lambda j: (0, j)),   # lane-dense output
        compiler_params=pltpu.CompilerParams(
            dimension_semantics=("parallel",),
            vmem_limit_bytes=vmem_limit,
        ),
        cost_estimate=pl.CostEstimate(
            flops=2 * G_pad * N_pad * H_pad,
            transcendentals=N_pad * n_h_tiles,
            bytes_accessed=2 * N_pad * H_pad + 8 * N_pad * n_h_tiles + 4 * G_pad * H_pad,
        ),
    )(s_logits, batch_row, xp)

    return pooled[:G, :H]


def _reference(x, edge_index, batch, num_graphs, w_rel, w_root, bias):
    """Pure-JAX reference mirroring PyG GraphConv + segment softmax + global_add_pool."""
    N, H = x.shape
    src, dst = edge_index[0], edge_index[1]
    agg = jnp.zeros_like(x).at[dst].add(x[src])
    s = agg @ w_rel.reshape(H, 1) + x @ w_root.reshape(H, 1) + bias.reshape(1, 1)   # (N, 1)
    gmax = jnp.full((num_graphs, 1), -jnp.inf).at[batch].max(s)
    e = jnp.exp(s - gmax[batch])
    gsum = jnp.zeros((num_graphs, 1)).at[batch].add(e)
    scores = e / gsum[batch]
    return jnp.zeros((num_graphs, H)).at[batch].add(x * scores)


if __name__ == "__main__":
    key = jax.random.PRNGKey(0)
    N, H, G, E = 16, 32, 2, 24

    k_x, k_e1, k_e2, k_wr, k_wo, k_b = jax.random.split(key, 6)

    # Nodes 0..7 -> graph 0, nodes 8..15 -> graph 1.
    batch = jnp.concatenate([jnp.zeros(8, jnp.int32), jnp.ones(8, jnp.int32)])
    x = jax.random.normal(k_x, (N, H), dtype=jnp.float32)

    # Random intra-graph edges (src, dst).
    src0 = jax.random.randint(k_e1, (E // 2,), 0, 8)
    dst0 = jax.random.randint(k_e2, (E // 2,), 0, 8)
    src1 = jax.random.randint(k_e2, (E // 2,), 8, 16)
    dst1 = jax.random.randint(k_e1, (E // 2,), 8, 16)
    edge_index = jnp.stack([jnp.concatenate([src0, src1]),
                            jnp.concatenate([dst0, dst1])]).astype(jnp.int32)

    # GraphConv(hidden_dim, 1) parameters:
    #   lin_rel  : Linear(H, 1, bias=True)  -> w_rel (1, H), bias (1,)
    #   lin_root : Linear(H, 1, bias=False) -> w_root (1, H)
    w_rel = 0.1 * jax.random.normal(k_wr, (1, H), dtype=jnp.float32)
    w_root = 0.1 * jax.random.normal(k_wo, (1, H), dtype=jnp.float32)
    bias = 0.1 * jax.random.normal(k_b, (1,), dtype=jnp.float32)

    out = global_attention_pool(x, edge_index, batch, G, w_rel, w_root, bias)
    out = jax.block_until_ready(out)

    ref = _reference(x, edge_index, batch, G, w_rel, w_root, bias)
    assert out.shape == (G, H)
    # bf16 operands (x, y, scores) => compare at bf16-level tolerance against the f32 reference.
    assert jnp.allclose(out, ref, atol=5e-2, rtol=5e-2), "mismatch vs JAX reference"

    print("KERNEL_OK")
</pallas_src>

<mosaic_0001>
module attributes {stable_mosaic.version = 11 : i64} {
  func.func @_agg_kernel(%arg0: i32, %arg1: memref<128x128xi8, #tpu.memory_space<vmem>>, %arg2: memref<8x128xbf16, #tpu.memory_space<vmem>>, %arg3: memref<1x128xf32, #tpu.memory_space<vmem>>, %arg4: memref<1x128xf32, #tpu.memory_space<vmem>>) attributes {dimension_semantics = [#tpu.dimension_semantics<parallel>], iteration_bounds = array<i64: 1>, scalar_prefetch = 0 : i64, scratch_operands = 0 : i64, tpu.core_type = #tpu.core_type<tc>, window_params = [{transform_indices = @transform_0, window_bounds = array<i64: 128, 128>}, {pipeline_mode = #tpu.pipeline_mode<synchronous>, transform_indices = @transform_1, window_bounds = array<i64: 8, 128>}, {transform_indices = @transform_2, window_bounds = array<i64: 1, 128>}, {transform_indices = @transform_3, window_bounds = array<i64: 1, 128>}]} {
    %c0 = arith.constant 0 : index
    %c0_0 = arith.constant 0 : index
    %0 = vector.load %arg1[%c0, %c0_0] : memref<128x128xi8, #tpu.memory_space<vmem>>, vector<128x128xi8>
    %1 = arith.sitofp %0 : vector<128x128xi8> to vector<128x128xbf16>
    %c0_1 = arith.constant 0 : index
    %c0_2 = arith.constant 0 : index
    %2 = vector.load %arg2[%c0_1, %c0_2] : memref<8x128xbf16, #tpu.memory_space<vmem>>, vector<8x128xbf16>
    %cst = arith.constant dense<0.000000e+00> : vector<8x128xf32>
    %3 = tpu.matmul %2, %1, %cst {dimension_numbers = #tpu.dot_dimension_numbers<[1], [0], [0], [1], [0, 0, 1, 1], [], []>} : vector<8x128xbf16>, vector<128x128xbf16>, vector<8x128xf32> -> vector<8x128xf32>
    %4 = vector.extract_strided_slice %3 {offsets = [0, 0], sizes = [1, 128], strides = [1, 1]} : vector<8x128xf32> to vector<1x128xf32>
    %c0_3 = arith.constant 0 : index
    %c0_4 = arith.constant 0 : index
    %5 = vector.load %arg3[%c0_3, %c0_4] : memref<1x128xf32, #tpu.memory_space<vmem>>, vector<1x128xf32>
    %6 = arith.addf %4, %5 : vector<1x128xf32>
    %c0_5 = arith.constant 0 : index
    %c0_6 = arith.constant 0 : index
    %7 = vector.load %arg4[%c0_5, %c0_6] : memref<1x128xf32, #tpu.memory_space<vmem>>, vector<1x128xf32>
    tpu.vector_store %arg4[%c0_5, %c0_6], %6 {strides = array<i32>} : memref<1x128xf32, #tpu.memory_space<vmem>>, vector<1x128xf32>,
    return
  }
  func.func @transform_0(%arg0: i32) -> (i32, i32) {
    %c0_i32 = arith.constant 0 : i32
    %c0_i32_0 = arith.constant 0 : i32
    return %c0_i32, %arg0 : i32, i32
  }
  func.func @transform_1(%arg0: i32) -> (i32, i32) {
    %c0_i32 = arith.constant 0 : i32
    %c0_i32_0 = arith.constant 0 : i32
    %c0_i32_1 = arith.constant 0 : i32
    return %c0_i32, %c0_i32_0 : i32, i32
  }
  func.func @transform_2(%arg0: i32) -> (i32, i32) {
    %c0_i32 = arith.constant 0 : i32
    %c0_i32_0 = arith.constant 0 : i32
    return %c0_i32, %arg0 : i32, i32
  }
  func.func @transform_3(%arg0: i32) -> (i32, i32) {
    %c0_i32 = arith.constant 0 : i32
    %c0_i32_0 = arith.constant 0 : i32
    return %c0_i32, %arg0 : i32, i32
  }
}

</mosaic_0001>

<llo_original>
// kernel: tpu_custom_call.1
$region0: #{tpu_custom_call.1}
  #allocation0 [shape = 'u32[]', space=smem, size = 0x4, offset = 0x4, fixed_abs, tag = 'smem constant byte address 0x4 - core index']
  #allocation1 [shape = 'u32[144,128]{1,0:T(1,128)}', space=vmem, size = 0x12000, scoped, tag = 'internal scratch']
  %s0 = inlined_call_operand.hbm [shape: s8[128,128], index: 0, kind: input, shape index: {}]
  %s1 = inlined_call_operand.hbm [shape: bf16[8,128], index: 1, kind: input, shape index: {}]
  %s2 = inlined_call_operand.vmem [shape: f32[1,128], index: 2, kind: input, shape index: {}]
  %s3 = inlined_call_operand.hbm [shape: f32[1,128], index: 3, kind: output, shape index: {}]
  %s4 = sld [smem:[#allocation0]]
  $region30: #{tpu_custom_call.1} parent=0
    _
  %s6 = ssub.s32 1, %s4
  %s7 = scalar_select 0, %s6, %s4
  $region1: #{tpu_custom_call.1} parent=0
    #allocation2 [shape = 'u8[16384]{0}', space=vmem, size = 0x4000, scoped, tag = 'input window, operand 0, single buffered']
    #allocation3 [shape = 's32[1]{0}', space=sflag, size = 0x4, scoped, tag = 'scoped memory for tpu_custom_call.1']
    #allocation4 [shape = 's32[1]{0}', space=sflag, size = 0x4, scoped, tag = 'scoped memory for tpu_custom_call.1']
    #allocation5 [shape = 'u8[2048]{0}', space=vmem, size = 0x800, scoped, tag = 'input window, operand 1, single buffered']
    #allocation6 [shape = 's32[1]{0}', space=sflag, size = 0x4, scoped, tag = 'scoped memory for tpu_custom_call.1']
    #allocation7 [shape = 'u8[512]{0}', space=vmem, size = 0x400, scoped, tag = 'output window, operand 0, single buffered']
    %8 = vsyncpa [#allocation3], 0
    %9 = vsyncpa [#allocation6], 0
    %10 = vsyncpa [#allocation4], 0
    // Predicated region
    $region2: #{tpu_custom_call.1} parent=1 // pred_check
      _
    $region3: #{tpu_custom_call.1} parent=1 // pred_check_branch
      %12 = sbr.rel (0) target = $region5
    $region4: #{tpu_custom_call.1} parent=1 // pred_region
      %s14 = ssub.s32 512, 512
      %15 = vsyncadd [#allocation3], %s14
      %s16 = sshll.u32 [#allocation2], 4
      %s17 = int_to_ptr.vmem [resolvable:$true] %s16
      %22 = dma.hbm_to_vmem [thread:$0]  %s0, 512, %s17, [#allocation3], 128, 128, 8
    $region5: #{tpu_custom_call.1} parent=1 // pred_fallthru
      _
    // Predicated region
    $region6: #{tpu_custom_call.1} parent=1 // pred_check
      _
    $region7: #{tpu_custom_call.1} parent=1 // pred_check_branch
      %24 = sbr.rel (0) target = $region9
    $region8: #{tpu_custom_call.1} parent=1 // pred_region
      %s26 = ssub.s32 64, 64
      %27 = vsyncadd [#allocation6], %s26
      %s29 = sshll.u32 [#allocation5], 4
      %s30 = int_to_ptr.vmem [resolvable:$true] %s29
      %32 = dma.hbm_to_vmem [thread:$0]  %s1, 64, %s30, [#allocation6]
    $region9: #{tpu_custom_call.1} parent=1 // pred_fallthru
      _
    // Predicated region
    $region10: #{tpu_custom_call.1} parent=1 // pred_check
      _
    $region11: #{tpu_custom_call.1} parent=1 // pred_check_branch
      %34 = sbr.rel (0) target = $region13
    $region12: #{tpu_custom_call.1} parent=1 // pred_region
      _
    $region13: #{tpu_custom_call.1} parent=1 // pred_fallthru
      _
    // Predicated region
    $region14: #{tpu_custom_call.1} parent=1 // pred_check
      _
    $region15: #{tpu_custom_call.1} parent=1 // pred_check_branch
      %36 = sbr.rel (0) target = $region17
    $region16: #{tpu_custom_call.1} parent=1 // pred_region
      %37 = dma.done [#allocation3], 512
    $region17: #{tpu_custom_call.1} parent=1 // pred_fallthru
      _
    // Predicated region
    $region18: #{tpu_custom_call.1} parent=1 // pred_check
      _
    $region19: #{tpu_custom_call.1} parent=1 // pred_check_branch
      %39 = sbr.rel (0) target = $region21
    $region20: #{tpu_custom_call.1} parent=1 // pred_region
      %40 = dma.done [#allocation6], 64
    $region21: #{tpu_custom_call.1} parent=1 // pred_fallthru
      _
    %v42 = vld [vmem:[#allocation2] sm:$0xff]
    %v43 = vld [vmem:[#allocation2 + $0x8] sm:$0xff]
    %v44 = vld [vmem:[#allocation2 + $0x10] sm:$0xff]
    %v45 = vld [vmem:[#allocation2 + $0x18] sm:$0xff]
    %v46 = vunpack.c.l.s8.bf16 %v42
    %v47 = vunpack.c.h.s8.bf16 %v42
    %v48 = vunpack.c.l.s8.bf16 %v43
    %v49 = vunpack.c.h.s8.bf16 %v43
    %v50 = vunpack.c.l.s8.bf16 %v44
    %v51 = vunpack.c.h.s8.bf16 %v44
    %v52 = vunpack.c.l.s8.bf16 %v45
    %v53 = vunpack.c.h.s8.bf16 %v45
    %v54 = vld [vmem:[#allocation5] sm:$0xf]
    %55 = vmatprep.subr.bf16.mxu0 0
    %56 = vmatpush1.bf16.msra.mxu0 %v53
    %57 = vmatprep.subr.bf16.mxu0 0
    %58 = vmatpush1.bf16.msra.mxu0 %v52
    %59 = vmatprep.subr.bf16.mxu0 0
    %60 = vmatpush1.bf16.msra.mxu0 %v51
    %61 = vmatprep.subr.bf16.mxu0 0
    %62 = vmatpush1.bf16.msra.mxu0 %v50
    %63 = vmatprep.subr.bf16.mxu0 0
    %64 = vmatpush1.bf16.msra.mxu0 %v49
    %65 = vmatprep.subr.bf16.mxu0 0
    %66 = vmatpush1.bf16.msra.mxu0 %v48
    %67 = vmatprep.subr.bf16.mxu0 0
    %68 = vmatpush1.bf16.msra.mxu0 %v47
    %69 = vmatprep.subr.bf16.mxu0 0
    %70 = vmatpush1.bf16.msra.mxu0 %v46
    %71 = vmatprep.subr.bf16.mxu0 0
    %72 = vmatpush2.bf16.msra.mxu0 0
    %73 = vmatprep.subr.bf16.mxu0 0
    %74 = vmatpush2.bf16.msra.mxu0 0
    %75 = vmatprep.subr.bf16.mxu0 0
    %76 = vmatpush2.bf16.msra.mxu0 0
    %77 = vmatprep.subr.bf16.mxu0 0
    %78 = vmatpush2.bf16.msra.mxu0 0
    %79 = vmatprep.subr.bf16.mxu0 0
    %80 = vmatpush2.bf16.msra.mxu0 0
    %81 = vmatprep.subr.bf16.mxu0 0
    %82 = vmatpush2.bf16.msra.mxu0 0
    %83 = vmatprep.subr.bf16.mxu0 0
    %84 = vmatpush2.bf16.msra.mxu0 0
    %85 = vmatprep.subr.bf16.mxu0 0
    %86 = vmatpush2.bf16.msra.mxu0 0
    %87 = vmatprep.mubr.bf16.mxu0 0
    %88 = vmatmul.mubr.bf16.gmra.mxu0 %v54
    %v89 = vpop.f32.mrf.mxu0
    %v90 = vadd.f32 0.0, %v89
    %v91 = vpop.f32.mrf.mxu0
    %v92 = vpop.f32.mrf.mxu0
    %v93 = vpop.f32.mrf.mxu0
    %94 = vdwg.mxu0
    %v95 = vld [vmem:[%s2] sm:$0x1]
    %v96 = vadd.f32 %v90, %v95
    %97 = vst [vmem:[#allocation7] sm:$0x1] %v96
    // Predicated region
    $region22: #{tpu_custom_call.1} parent=1 // pred_check
      _
    $region23: #{tpu_custom_call.1} parent=1 // pred_check_branch
      %99 = sbr.rel (0) target = $region25
    $region24: #{tpu_custom_call.1} parent=1 // pred_region
      %s101 = ssub.s32 16, 16
      %102 = vsyncadd [#allocation4], %s101
      %s104 = sshll.u32 [#allocation7], 4
      %s105 = int_to_ptr.vmem [resolvable:$true] %s104
      %107 = dma.vmem_to_hbm [thread:$0]  %s105, 16, %s3, [#allocation4]
    $region25: #{tpu_custom_call.1} parent=1 // pred_fallthru
      _
    // Predicated region
    $region26: #{tpu_custom_call.1} parent=1 // pred_check
      _
    $region27: #{tpu_custom_call.1} parent=1 // pred_check_branch
      %109 = sbr.rel (0) target = $region29
    $region28: #{tpu_custom_call.1} parent=1 // pred_region
      %110 = dma.done [#allocation4], 16
    $region29: #{tpu_custom_call.1} parent=1 // pred_fallthru
      _
    %111 = vsyncpa [#allocation3], 1
    %112 = vsyncpa [#allocation6], 1
    %113 = vsyncpa [#allocation4], 1

</llo_original>
